<compile_context>
chip_gen: v7x
topology: tpu7x:2x2x1
jax: 0.10.0
libtpu: 0.0.40
codegen_flags: <defaults>
</compile_context>

<pallas_src>
import jax
import jax.numpy as jnp
from jax import lax
from jax.experimental import pallas as pl
from jax.experimental.pallas import tpu as pltpu


def cpc_kernel(x_ref, y_ref, w_ref, b_ref, o_ref):
    # Per-instance blocks (leading instance dim squeezed away by BlockSpec):
    #   x_ref: (B, Dx)   y_ref: (B, Dy)   w_ref: (Dy, Dx)   b_ref: (1, Dx)
    #   o_ref: (1, 128)  -- lane-dense row; only column 0 is consumed.
    x = x_ref[...]
    y = y_ref[...]

    # x_pred = Linear(y).  Weight is stored as (in, out) = (Dy, Dx) so no
    # transpose is needed.  f32 MXU here; cast operands to bf16 only for
    # production-sized B/Dx (keep normalization + rsqrt in f32 if so).
    x_pred = jnp.dot(y, w_ref[...], preferred_element_type=jnp.float32) + b_ref[...]

    # L2-normalize along the feature dim: rsqrt (EUP slot) + multiply (VPU),
    # no divide.  NOTE: zero-norm rows yield inf/NaN exactly like the torch
    # reference.
    x_pred_n = x_pred * lax.rsqrt(
        jnp.sum(x_pred * x_pred, axis=-1, keepdims=True))                # (B, Dx)
    x_n = x * lax.rsqrt(jnp.sum(x * x, axis=-1, keepdims=True))          # (B, Dx)

    # Positive scores: direct O(B*Dx) product (matches torch; avoids O(B^2)
    # iota/mask/select VPU work at large B).
    pos = jnp.sum(x_n * x_pred_n, axis=-1, keepdims=True)                # (B, 1)

    # All-pairs similarities; contract the last dims of both operands so no
    # explicit transpose of x_pred_n is materialized.
    scores = lax.dot_general(
        x_n, x_pred_n,
        dimension_numbers=(((1,), (1,)), ((), ())),
        preferred_element_type=jnp.float32)                              # (B, B)

    # Row-wise logsumexp WITHOUT the max shift: scores are cosine sims of
    # L2-normalized vectors, bounded in [-1, 1], so exp() cannot overflow.
    neg = jnp.log(jnp.sum(jnp.exp(scores), axis=-1, keepdims=True))      # (B, 1)

    nce = -jnp.mean(pos - neg)                                           # ()
    o_ref[...] = jnp.full((1, 128), nce, jnp.float32)


def cpc_forward_batched(x, y, w, b):
    """N independent CPC instances in one kernel.

    x: (N, B, Dx), y: (N, B, Dy), w: (N, Dy, Dx), b: (N, 1, Dx)
    returns: (N,) per-instance NCE losses.
    """
    N, B, Dx = x.shape
    _, _, Dy = y.shape
    assert y.shape == (N, B, Dy)
    assert w.shape == (N, Dy, Dx)
    assert b.shape == (N, 1, Dx)

    out = pl.pallas_call(
        cpc_kernel,
        out_shape=jax.ShapeDtypeStruct((N, 1, 128), jnp.float32),
        grid=(N,),
        in_specs=[
            pl.BlockSpec((None, B, Dx), lambda i: (i, 0, 0)),   # x
            pl.BlockSpec((None, B, Dy), lambda i: (i, 0, 0)),   # y
            pl.BlockSpec((None, Dy, Dx), lambda i: (i, 0, 0)),  # w
            pl.BlockSpec((None, 1, Dx), lambda i: (i, 0, 0)),   # b
        ],
        out_specs=pl.BlockSpec((None, 1, 128), lambda i: (i, 0, 0)),
        compiler_params=pltpu.CompilerParams(
            dimension_semantics=("parallel",),
            vmem_limit_bytes=32 * 1024 * 1024,
        ),
    )(x, y, w, b)
    return out[:, 0, 0]


def cpc_forward(x, y, w, b):
    """Single-instance forward, same semantics as CPC.forward(x, y)."""
    return cpc_forward_batched(x[None], y[None], w[None], b[None])[0]


def cpc_reference(x, y, w, b):
    """Pure-JAX reference for one instance."""
    x_pred = y @ w + b
    x_pred = x_pred / jnp.linalg.norm(x_pred, axis=1, keepdims=True)
    xn = x / jnp.linalg.norm(x, axis=1, keepdims=True)
    pos = jnp.sum(xn * x_pred, axis=-1)
    neg = jax.scipy.special.logsumexp(xn @ x_pred.T, axis=-1)
    return -(pos - neg).mean()


if __name__ == "__main__":
    # N stacked CPC instances (e.g. the cpc_zt / cpc_zv / cpc_za heads of MMIM
    # evaluated in one launch).  x_size is lane-dense (128).
    N, B, x_size, y_size = 4, 8, 128, 32

    key = jax.random.PRNGKey(0)
    kx, ky, kw, kb = jax.random.split(key, 4)

    x = jax.random.normal(kx, (N, B, x_size), dtype=jnp.float32)
    y = jax.random.normal(ky, (N, B, y_size), dtype=jnp.float32)

    # Deterministic Linear(y_size -> x_size) params, torch-like uniform scale,
    # stored as (in, out) = (y_size, x_size).
    bound = 1.0 / (y_size ** 0.5)
    w = jax.random.uniform(kw, (N, y_size, x_size), jnp.float32, -bound, bound)
    b = jax.random.uniform(kb, (N, 1, x_size), jnp.float32, -bound, bound)

    nce = cpc_forward_batched(x, y, w, b)
    nce = jax.block_until_ready(nce)

    ref = jax.vmap(cpc_reference)(x, y, w, b)
    assert jnp.allclose(nce, ref, atol=1e-4, rtol=1e-4), (nce, ref)

    # Single-instance API (matches the original CPC.forward signature).
    single = cpc_forward(x[0], y[0], w[0], b[0])
    single = jax.block_until_ready(single)
    assert jnp.allclose(single, ref[0], atol=1e-4, rtol=1e-4), (single, ref[0])

    print("KERNEL_OK")
</pallas_src>

<mosaic_0001>
module attributes {stable_mosaic.version = 11 : i64} {
  func.func @cpc_kernel(%arg0: i32, %arg1: memref<1x8x128xf32, #tpu.memory_space<vmem>>, %arg2: memref<1x8x32xf32, #tpu.memory_space<vmem>>, %arg3: memref<1x32x128xf32, #tpu.memory_space<vmem>>, %arg4: memref<1x1x128xf32, #tpu.memory_space<vmem>>, %arg5: memref<1x1x128xf32, #tpu.memory_space<vmem>>) attributes {dimension_semantics = [#tpu.dimension_semantics<parallel>], iteration_bounds = array<i64: 4>, scalar_prefetch = 0 : i64, scratch_operands = 0 : i64, tpu.core_type = #tpu.core_type<tc>, window_params = [{transform_indices = @transform_0, window_bounds = array<i64: 1, 8, 128>}, {transform_indices = @transform_1, window_bounds = array<i64: 1, 8, 32>}, {transform_indices = @transform_2, window_bounds = array<i64: 1, 32, 128>}, {transform_indices = @transform_3, window_bounds = array<i64: 1, 1, 128>}, {transform_indices = @transform_4, window_bounds = array<i64: 1, 1, 128>}]} {
    %c0 = arith.constant 0 : index
    %c0_0 = arith.constant 0 : index
    %c0_1 = arith.constant 0 : index
    %0 = vector.load %arg1[%c0, %c0_0, %c0_1] : memref<1x8x128xf32, #tpu.memory_space<vmem>>, vector<1x8x128xf32>
    %1 = vector.shape_cast %0 : vector<1x8x128xf32> to vector<8x128xf32>
    %c0_2 = arith.constant 0 : index
    %c0_3 = arith.constant 0 : index
    %c0_4 = arith.constant 0 : index
    %2 = vector.load %arg2[%c0_2, %c0_3, %c0_4] : memref<1x8x32xf32, #tpu.memory_space<vmem>>, vector<1x8x32xf32>
    %3 = vector.shape_cast %2 : vector<1x8x32xf32> to vector<8x32xf32>
    %c0_5 = arith.constant 0 : index
    %c0_6 = arith.constant 0 : index
    %c0_7 = arith.constant 0 : index
    %4 = vector.load %arg3[%c0_5, %c0_6, %c0_7] : memref<1x32x128xf32, #tpu.memory_space<vmem>>, vector<1x32x128xf32>
    %5 = vector.shape_cast %4 : vector<1x32x128xf32> to vector<32x128xf32>
    %cst = arith.constant dense<0.000000e+00> : vector<8x128xf32>
    %6 = tpu.matmul %3, %5, %cst {dimension_numbers = #tpu.dot_dimension_numbers<[1], [0], [0], [1], [0, 0, 1, 1], [], []>} : vector<8x32xf32>, vector<32x128xf32>, vector<8x128xf32> -> vector<8x128xf32>
    %c0_8 = arith.constant 0 : index
    %c0_9 = arith.constant 0 : index
    %c0_10 = arith.constant 0 : index
    %7 = vector.load %arg4[%c0_8, %c0_9, %c0_10] : memref<1x1x128xf32, #tpu.memory_space<vmem>>, vector<1x1x128xf32>
    %8 = vector.shape_cast %7 : vector<1x1x128xf32> to vector<1x128xf32>
    %9 = vector.broadcast %8 : vector<1x128xf32> to vector<8x128xf32>
    %10 = arith.addf %6, %9 : vector<8x128xf32>
    %11 = arith.mulf %10, %10 : vector<8x128xf32>
    %cst_11 = arith.constant dense<0.000000e+00> : vector<8xf32>
    %12 = vector.multi_reduction <add>, %11, %cst_11 [1] : vector<8x128xf32> to vector<8xf32>
    %13 = vector.shape_cast %12 : vector<8xf32> to vector<8x1xf32>
    %14 = math.rsqrt %13 : vector<8x1xf32>
    %15 = vector.broadcast %14 : vector<8x1xf32> to vector<8x128xf32>
    %16 = arith.mulf %10, %15 : vector<8x128xf32>
    %17 = arith.mulf %1, %1 : vector<8x128xf32>
    %cst_12 = arith.constant dense<0.000000e+00> : vector<8xf32>
    %18 = vector.multi_reduction <add>, %17, %cst_12 [1] : vector<8x128xf32> to vector<8xf32>
    %19 = vector.shape_cast %18 : vector<8xf32> to vector<8x1xf32>
    %20 = math.rsqrt %19 : vector<8x1xf32>
    %21 = vector.broadcast %20 : vector<8x1xf32> to vector<8x128xf32>
    %22 = arith.mulf %1, %21 : vector<8x128xf32>
    %23 = arith.mulf %22, %16 : vector<8x128xf32>
    %cst_13 = arith.constant dense<0.000000e+00> : vector<8xf32>
    %24 = vector.multi_reduction <add>, %23, %cst_13 [1] : vector<8x128xf32> to vector<8xf32>
    %25 = vector.shape_cast %24 : vector<8xf32> to vector<8x1xf32>
    %cst_14 = arith.constant dense<0.000000e+00> : vector<8x8xf32>
    %26 = tpu.matmul %22, %16, %cst_14 {dimension_numbers = #tpu.dot_dimension_numbers<[1], [1], [0], [0], [0, 0, 1, 0], [], []>} : vector<8x128xf32>, vector<8x128xf32>, vector<8x8xf32> -> vector<8x8xf32>
    %27 = math.exp %26 : vector<8x8xf32>
    %cst_15 = arith.constant dense<0.000000e+00> : vector<8xf32>
    %28 = vector.multi_reduction <add>, %27, %cst_15 [1] : vector<8x8xf32> to vector<8xf32>
    %29 = vector.shape_cast %28 : vector<8xf32> to vector<8x1xf32>
    %30 = math.log %29 : vector<8x1xf32>
    %31 = arith.subf %25, %30 : vector<8x1xf32>
    %32 = vector.shape_cast %31 : vector<8x1xf32> to vector<1x8x1xf32>
    %cst_16 = arith.constant dense<0.000000e+00> : vector<1xf32>
    %33 = vector.multi_reduction <add>, %32, %cst_16 [1, 2] : vector<1x8x1xf32> to vector<1xf32>
    %34 = vector.shape_cast %33 : vector<1xf32> to vector<1x1x1xf32>
    %35 = vector.extract %34[0, 0, 0] : f32 from vector<1x1x1xf32>
    %cst_17 = arith.constant 8.000000e+00 : f32
    %36 = arith.divf %35, %cst_17 : f32
    %cst_18 = arith.constant 0.000000e+00 : f32
    %37 = arith.subf %cst_18, %36 : f32
    %38 = vector.broadcast %37 : f32 to vector<1x128xf32>
    %c0_19 = arith.constant 0 : index
    %c0_20 = arith.constant 0 : index
    %c0_21 = arith.constant 0 : index
    %39 = vector.load %arg5[%c0_19, %c0_20, %c0_21] : memref<1x1x128xf32, #tpu.memory_space<vmem>>, vector<1x1x128xf32>
    %40 = vector.shape_cast %39 : vector<1x1x128xf32> to vector<1x128xf32>
    %41 = vector.shape_cast %38 : vector<1x128xf32> to vector<1x1x128xf32>
    tpu.vector_store %arg5[%c0_19, %c0_20, %c0_21], %41 {strides = array<i32>} : memref<1x1x128xf32, #tpu.memory_space<vmem>>, vector<1x1x128xf32>,
    return
  }
  func.func @transform_0(%arg0: i32) -> (i32, i32, i32) {
    %c0_i32 = arith.constant 0 : i32
    %c0_i32_0 = arith.constant 0 : i32
    %c0_i32_1 = arith.constant 0 : i32
    return %arg0, %c0_i32, %c0_i32_0 : i32, i32, i32
  }
  func.func @transform_1(%arg0: i32) -> (i32, i32, i32) {
    %c0_i32 = arith.constant 0 : i32
    %c0_i32_0 = arith.constant 0 : i32
    %c0_i32_1 = arith.constant 0 : i32
    return %arg0, %c0_i32, %c0_i32_0 : i32, i32, i32
  }
  func.func @transform_2(%arg0: i32) -> (i32, i32, i32) {
    %c0_i32 = arith.constant 0 : i32
    %c0_i32_0 = arith.constant 0 : i32
    %c0_i32_1 = arith.constant 0 : i32
    return %arg0, %c0_i32, %c0_i32_0 : i32, i32, i32
  }
  func.func @transform_3(%arg0: i32) -> (i32, i32, i32) {
    %c0_i32 = arith.constant 0 : i32
    %c0_i32_0 = arith.constant 0 : i32
    %c0_i32_1 = arith.constant 0 : i32
    return %arg0, %c0_i32, %c0_i32_0 : i32, i32, i32
  }
  func.func @transform_4(%arg0: i32) -> (i32, i32, i32) {
    %c0_i32 = arith.constant 0 : i32
    %c0_i32_0 = arith.constant 0 : i32
    %c0_i32_1 = arith.constant 0 : i32
    return %arg0, %c0_i32, %c0_i32_0 : i32, i32, i32
  }
}

</mosaic_0001>

<llo_original>
// kernel: tpu_custom_call.1
$region0: #{tpu_custom_call.1}
  #allocation0 [shape = 'u32[]', space=smem, size = 0x4, offset = 0x4, fixed_abs, tag = 'smem constant byte address 0x4 - core index']
  #allocation1 [shape = 'u32[144,128]{1,0:T(1,128)}', space=vmem, size = 0x12000, scoped, tag = 'internal scratch']
  %s0 = inlined_call_operand.hbm [shape: f32[4,8,128], index: 0, kind: input, shape index: {}]
  %s1 = inlined_call_operand.hbm [shape: f32[4,8,32], index: 1, kind: input, shape index: {}]
  %s2 = inlined_call_operand.hbm [shape: f32[4,32,128], index: 2, kind: input, shape index: {}]
  %s3 = inlined_call_operand.vmem [shape: f32[4,1,128], index: 3, kind: input, shape index: {}]
  %s4 = inlined_call_operand.hbm [shape: f32[4,1,128], index: 4, kind: output, shape index: {}]
  %s5 = sld [smem:[#allocation0]]
  $region61: #{tpu_custom_call.1} parent=0
    _
  %s7 = ssub.s32 1, %s5
  %s8 = scalar_select 0, %s7, %s5
  $region1: #{tpu_custom_call.1} parent=0
    #allocation2 [shape = 'u8[8192]{0}', space=vmem, size = 0x2000, scoped, tag = 'input window, operand 0']
    #allocation3 [shape = 's32[2]{0}', space=sflag, size = 0x8, scoped, tag = 'scoped memory for tpu_custom_call.1']
    #allocation4 [shape = 's32[2]{0}', space=sflag, size = 0x8, scoped, tag = 'scoped memory for tpu_custom_call.1']
    #allocation5 [shape = 'u8[8192]{0}', space=vmem, size = 0x2000, scoped, tag = 'input window, operand 1']
    #allocation6 [shape = 's32[2]{0}', space=sflag, size = 0x8, scoped, tag = 'scoped memory for tpu_custom_call.1']
    #allocation7 [shape = 'u8[32768]{0}', space=vmem, size = 0x8000, scoped, tag = 'input window, operand 2']
    #allocation8 [shape = 'u8[1024]{0}', space=vmem, size = 0x400, scoped, tag = 'output window, operand 0']
    %9 = vsyncpa [#allocation3], 0
    %s10 = scalar_lea.sflag [#allocation3], 1
    %11 = vsyncpa %s10, 0
    %12 = vsyncpa [#allocation6], 0
    %s13 = scalar_lea.sflag [#allocation6], 1
    %14 = vsyncpa %s13, 0
    %15 = vsyncpa [#allocation4], 0
    %s16 = scalar_lea.sflag [#allocation4], 1
    %17 = vsyncpa %s16, 0
    loop: start=0, step=1, limit=6
    $region2: #{tpu_custom_call.1} parent=1 // loop_pre_header
      _
    $region3: #{tpu_custom_call.1} parent=1 // loop_header
      %s19 = sphi 0, %s23
      %p20 = scmp.ge.s32.totalorder %s19, 6
      %s29 = sphi 0, %s31
      %s32 = sphi 0, %s29
      %s33 = sphi 0, %s32
      %s49 = sphi 0, %s33
      %s55 = sphi 0, %s57
      %s58 = sphi 0, %s55
      %s59 = sphi 0, %s58
      %s75 = sphi 0, %s59
      %s81 = sphi 0, %s83
      %s84 = sphi 0, %s81
      %s85 = sphi 0, %s84
      %s101 = sphi 0, %s85
      %s107 = sphi 0, %s109
      %s110 = sphi 0, %s107
      %s111 = sphi 0, %s110
      %s127 = sphi 0, %s111
      %s133 = sphi 0, %s135
      %s136 = sphi 0, %s133
      %s137 = sphi 0, %s136
      %s153 = sphi 0, %s137
    $region4: #{tpu_custom_call.1} parent=1 // loop_header_branch
      %22 = sbr.rel (%p20) target = $region8
    $region5: #{tpu_custom_call.1} parent=1 // loop_body
      %s24 = ssub.s32 %s19, 1
      %s25 = ssub.s32 %s19, 2
      %s26 = sadd.s32 %s19, 1
      %s27 = ssub.s32 %s19, %s26
      %p28 = scmp.eq.s32.totalorder %s27, 0
      %s30 = sadd.s32 %s29, 1
      %s31 = scalar_select %p28, %s29, %s30
      %p34 = pneg %p28
      %p35 = scmp.eq.s32.totalorder %s19, 3
      %p36 = por %p34, %p35
      %p37 = scmp.ne.s32.totalorder %s29, %s32
      %p38 = scmp.eq.s32.totalorder %s19, 0
      %p39 = por %p37, %p38
      %p40 = scmp.ne.s32.totalorder %s29, %s32
      %p41 = scmp.eq.s32.totalorder %s24, 3
      %p42 = por %p40, %p41
      %p43 = scmp.ne.s32.totalorder %s32, %s33
      %p44 = scmp.eq.s32.totalorder %s24, 0
      %p45 = por %p43, %p44
      %p46 = scmp.ne.s32.totalorder %s32, %s33
      %p47 = scmp.eq.s32.totalorder %s25, 3
      %p48 = por %p46, %p47
      %p50 = scmp.ne.s32.totalorder %s33, %s49
      %p51 = scmp.eq.s32.totalorder %s25, 0
      %p52 = por %p50, %p51
      %s53 = ssub.s32 %s19, %s26
      %p54 = scmp.eq.s32.totalorder %s53, 0
      %s56 = sadd.s32 %s55, 1
      %s57 = scalar_select %p54, %s55, %s56
      %p60 = pneg %p54
      %p61 = scmp.eq.s32.totalorder %s19, 3
      %p62 = por %p60, %p61
      %p63 = scmp.ne.s32.totalorder %s55, %s58
      %p64 = scmp.eq.s32.totalorder %s19, 0
      %p65 = por %p63, %p64
      %p66 = scmp.ne.s32.totalorder %s55, %s58
      %p67 = scmp.eq.s32.totalorder %s24, 3
      %p68 = por %p66, %p67
      %p69 = scmp.ne.s32.totalorder %s58, %s59
      %p70 = scmp.eq.s32.totalorder %s24, 0
      %p71 = por %p69, %p70
      %p72 = scmp.ne.s32.totalorder %s58, %s59
      %p73 = scmp.eq.s32.totalorder %s25, 3
      %p74 = por %p72, %p73
      %p76 = scmp.ne.s32.totalorder %s59, %s75
      %p77 = scmp.eq.s32.totalorder %s25, 0
      %p78 = por %p76, %p77
      %s79 = ssub.s32 %s19, %s26
      %p80 = scmp.eq.s32.totalorder %s79, 0
      %s82 = sadd.s32 %s81, 1
      %s83 = scalar_select %p80, %s81, %s82
      %p86 = pneg %p80
      %p87 = scmp.eq.s32.totalorder %s19, 3
      %p88 = por %p86, %p87
      %p89 = scmp.ne.s32.totalorder %s81, %s84
      %p90 = scmp.eq.s32.totalorder %s19, 0
      %p91 = por %p89, %p90
      %p92 = scmp.ne.s32.totalorder %s81, %s84
      %p93 = scmp.eq.s32.totalorder %s24, 3
      %p94 = por %p92, %p93
      %p95 = scmp.ne.s32.totalorder %s84, %s85
      %p96 = scmp.eq.s32.totalorder %s24, 0
      %p97 = por %p95, %p96
      %p98 = scmp.ne.s32.totalorder %s84, %s85
      %p99 = scmp.eq.s32.totalorder %s25, 3
      %p100 = por %p98, %p99
      %p102 = scmp.ne.s32.totalorder %s85, %s101
      %p103 = scmp.eq.s32.totalorder %s25, 0
      %p104 = por %p102, %p103
      %s105 = ssub.s32 %s19, %s26
      %p106 = scmp.eq.s32.totalorder %s105, 0
      %s108 = sadd.s32 %s107, 1
      %s109 = scalar_select %p106, %s107, %s108
      %p112 = pneg %p106
      %p113 = scmp.eq.s32.totalorder %s19, 3
      %p114 = por %p112, %p113
      %p115 = scmp.ne.s32.totalorder %s107, %s110
      %p116 = scmp.eq.s32.totalorder %s19, 0
      %p117 = por %p115, %p116
      %p118 = scmp.ne.s32.totalorder %s107, %s110
      %p119 = scmp.eq.s32.totalorder %s24, 3
      %p120 = por %p118, %p119
      %p121 = scmp.ne.s32.totalorder %s110, %s111
      %p122 = scmp.eq.s32.totalorder %s24, 0
      %p123 = por %p121, %p122
      %p124 = scmp.ne.s32.totalorder %s110, %s111
      %p125 = scmp.eq.s32.totalorder %s25, 3
      %p126 = por %p124, %p125
      %p128 = scmp.ne.s32.totalorder %s111, %s127
      %p129 = scmp.eq.s32.totalorder %s25, 0
      %p130 = por %p128, %p129
      %s131 = ssub.s32 %s19, %s26
      %p132 = scmp.eq.s32.totalorder %s131, 0
      %s134 = sadd.s32 %s133, 1
      %s135 = scalar_select %p132, %s133, %s134
      %p138 = pneg %p132
      %p139 = scmp.eq.s32.totalorder %s19, 3
      %p140 = por %p138, %p139
      %p141 = scmp.ne.s32.totalorder %s133, %s136
      %p142 = scmp.eq.s32.totalorder %s19, 0
      %p143 = por %p141, %p142
      %p144 = scmp.ne.s32.totalorder %s133, %s136
      %p145 = scmp.eq.s32.totalorder %s24, 3
      %p146 = por %p144, %p145
      %p147 = scmp.ne.s32.totalorder %s136, %s137
      %p148 = scmp.eq.s32.totalorder %s24, 0
      %p149 = por %p147, %p148
      %p150 = scmp.ne.s32.totalorder %s136, %s137
      %p151 = scmp.eq.s32.totalorder %s25, 3
      %p152 = por %p150, %p151
      %p154 = scmp.ne.s32.totalorder %s137, %s153
      %p155 = scmp.eq.s32.totalorder %s25, 0
      %p156 = por %p154, %p155
      %p157 = scmp.le.s32.totalorder 1, %s19
      %p158 = scmp.lt.s32.totalorder %s19, 5
      %p159 = pnand %p157, %p158
      %p160 = pneg %p159
      // Predicated region
      $region9: #{tpu_custom_call.1} parent=5 // pred_check
        _
      $region10: #{tpu_custom_call.1} parent=5 // pred_check_branch
        %162 = sbr.rel (%p159) target = $region12
      $region11: #{tpu_custom_call.1} parent=5 // pred_region
        %s163 = ssub.s32 %s19, 1
      $region12: #{tpu_custom_call.1} parent=5 // pred_fallthru
        _
      %p164 = scmp.lt.s32.totalorder %s19, 4
      // Predicated region
      $region13: #{tpu_custom_call.1} parent=5 // pred_check
        %p165 = pneg %p164
      $region14: #{tpu_custom_call.1} parent=5 // pred_check_branch
        %167 = sbr.rel (%p165) target = $region16
      $region15: #{tpu_custom_call.1} parent=5 // pred_region
        // Predicated region
        $region17: #{tpu_custom_call.1} parent=15 // pred_check
          %p168 = pneg %p39
        $region18: #{tpu_custom_call.1} parent=15 // pred_check_branch
          %170 = sbr.rel (%p168) target = $region20
        $region19: #{tpu_custom_call.1} parent=15 // pred_region
          %s171 = sand.u32 %s29, 1
          %s172 = scalar_lea.sflag [#allocation3], %s171
          %s173 = sand.u32 %s29, 1
          %s174 = smul.addr %s173, 8
          %s175 = scalar_lea.vmem [#allocation2], %s174
          %s177 = ssub.s32 128, 128
          %178 = vsyncadd %s172, %s177
          %s179 = smul.addr %s19, 128
          %s180 = scalar_lea.hbm %s0, %s179
          %s182 = sshll.u32 %s175, 4
          %s183 = int_to_ptr.vmem [resolvable:$true] %s182
          %185 = dma.hbm_to_vmem [thread:$0]  %s180, 128, %s183, %s172
        $region20: #{tpu_custom_call.1} parent=15 // pred_fallthru
          _
        // Predicated region
        $region21: #{tpu_custom_call.1} parent=15 // pred_check
          %p186 = pneg %p65
        $region22: #{tpu_custom_call.1} parent=15 // pred_check_branch
          %188 = sbr.rel (%p186) target = $region24
        $region23: #{tpu_custom_call.1} parent=15 // pred_region
          %s189 = sand.u32 %s19, 1
          %s190 = scalar_lea.sflag [#allocation6], %s189
          %s191 = sand.u32 %s55, 1
          %s192 = smul.addr %s191, 8
          %s193 = scalar_lea.vmem [#allocation5], %s192
          %s195 = ssub.s32 128, 128
          %196 = vsyncadd %s190, %s195
          %s197 = smul.addr %s19, 128
          %s198 = scalar_lea.hbm %s1, %s197
          %s200 = sshll.u32 %s193, 4
          %s201 = int_to_ptr.vmem [resolvable:$true] %s200
          %203 = dma.hbm_to_vmem [thread:$0]  %s198, 128, %s201, %s190
        $region24: #{tpu_custom_call.1} parent=15 // pred_fallthru
          _
        // Predicated region
        $region25: #{tpu_custom_call.1} parent=15 // pred_check
          %p204 = pneg %p91
        $region26: #{tpu_custom_call.1} parent=15 // pred_check_branch
          %206 = sbr.rel (%p204) target = $region28
        $region27: #{tpu_custom_call.1} parent=15 // pred_region
          %s207 = sand.u32 %s19, 1
          %s208 = scalar_lea.sflag [#allocation6], %s207
          %s209 = sand.u32 %s81, 1
          %s210 = smul.addr %s209, 32
          %s211 = scalar_lea.vmem [#allocation7], %s210
          %s213 = ssub.s32 512, 512
          %214 = vsyncadd %s208, %s213
          %s215 = smul.addr %s19, 4
          %s216 = smul.addr %s215, 128
          %s217 = scalar_lea.hbm %s2, %s216
          %s218 = sshll.u32 %s211, 4
          %s219 = int_to_ptr.vmem [resolvable:$true] %s218
          %224 = dma.hbm_to_vmem [thread:$0]  %s217, 512, %s219, %s208, 128, 128, 8
        $region28: #{tpu_custom_call.1} parent=15 // pred_fallthru
          _
        // Predicated region
        $region29: #{tpu_custom_call.1} parent=15 // pred_check
          %p225 = pneg %p117
        $region30: #{tpu_custom_call.1} parent=15 // pred_check_branch
          %227 = sbr.rel (%p225) target = $region32
        $region31: #{tpu_custom_call.1} parent=15 // pred_region
          %p228 = scmp.lt.s32.totalorder %s19, 3
          %s229 = scalar_select %p228, %s19, 3
          %s230 = scalar_lea.vmem %s3, %s229
        $region32: #{tpu_custom_call.1} parent=15 // pred_fallthru
          _
      $region16: #{tpu_custom_call.1} parent=5 // pred_fallthru
        _
      %p231 = scmp.le.s32.totalorder 1, %s19
      %p232 = scmp.lt.s32.totalorder %s19, 5
      %p233 = pnand %p231, %p232
      %p234 = pneg %p233
      // Predicated region
      $region33: #{tpu_custom_call.1} parent=5 // pred_check
        _
      $region34: #{tpu_custom_call.1} parent=5 // pred_check_branch
        %236 = sbr.rel (%p233) target = $region36
      $region35: #{tpu_custom_call.1} parent=5 // pred_region
        %s237 = ssub.s32 %s19, 1
        %s238 = sand.u32 %s32, 1
        %s239 = scalar_lea.sflag [#allocation3], %s238
        %s240 = sand.u32 %s32, 1
        %s241 = smul.addr %s240, 8
        %s242 = scalar_lea.vmem [#allocation2], %s241
        // Predicated region
        $region37: #{tpu_custom_call.1} parent=35 // pred_check
          %p243 = pneg %p45
        $region38: #{tpu_custom_call.1} parent=35 // pred_check_branch
          %245 = sbr.rel (%p243) target = $region40
        $region39: #{tpu_custom_call.1} parent=35 // pred_region
          %246 = dma.done %s239, 128
        $region40: #{tpu_custom_call.1} parent=35 // pred_fallthru
          _
        %s247 = sand.u32 %s24, 1
        %s248 = scalar_lea.sflag [#allocation6], %s247
        %s249 = sand.u32 %s58, 1
        %s250 = smul.addr %s249, 8
        %s251 = scalar_lea.vmem [#allocation5], %s250
        // Predicated region
        $region41: #{tpu_custom_call.1} parent=35 // pred_check
          %p252 = pneg %p71
        $region42: #{tpu_custom_call.1} parent=35 // pred_check_branch
          %254 = sbr.rel (%p252) target = $region44
        $region43: #{tpu_custom_call.1} parent=35 // pred_region
          %255 = dma.done %s248, 128
        $region44: #{tpu_custom_call.1} parent=35 // pred_fallthru
          _
        %s256 = sand.u32 %s24, 1
        %s257 = scalar_lea.sflag [#allocation6], %s256
        %s258 = sand.u32 %s84, 1
        %s259 = smul.addr %s258, 32
        %s260 = scalar_lea.vmem [#allocation7], %s259
        // Predicated region
        $region45: #{tpu_custom_call.1} parent=35 // pred_check
          %p261 = pneg %p97
        $region46: #{tpu_custom_call.1} parent=35 // pred_check_branch
          %263 = sbr.rel (%p261) target = $region48
        $region47: #{tpu_custom_call.1} parent=35 // pred_region
          %264 = dma.done %s257, 512
        $region48: #{tpu_custom_call.1} parent=35 // pred_fallthru
          _
        %s265 = sand.u32 %s32, 1
        %s266 = scalar_lea.sflag [#allocation3], %s265
        %s267 = sand.u32 %s32, 1
        %s268 = smul.addr %s267, 8
        %s269 = scalar_lea.vmem [#allocation2], %s268
        %p270 = pneg %p45
        %p271 = pneg %p42
        %s272 = sand.u32 %s24, 1
        %s273 = scalar_lea.sflag [#allocation6], %s272
        %s274 = sand.u32 %s58, 1
        %s275 = smul.addr %s274, 8
        %s276 = scalar_lea.vmem [#allocation5], %s275
        %p277 = pneg %p71
        %p278 = pneg %p68
        %s279 = sand.u32 %s24, 1
        %s280 = scalar_lea.sflag [#allocation6], %s279
        %s281 = sand.u32 %s84, 1
        %s282 = smul.addr %s281, 32
        %s283 = scalar_lea.vmem [#allocation7], %s282
        %p284 = pneg %p97
        %p285 = pneg %p94
        %p286 = scmp.lt.s32.totalorder %s24, 3
        %s287 = scalar_select %p286, %s24, 3
        %s288 = scalar_lea.vmem %s3, %s287
        %p289 = pneg %p123
        %p290 = pneg %p120
        %p291 = pneg %p149
        %p292 = pneg %p146
        %s293 = sand.u32 %s136, 1
        %s294 = scalar_lea.sflag [#allocation4], %s293
        %s295 = sand.u32 %s136, 1
        %s296 = scalar_lea.vmem [#allocation8], %s295
        %p297 = scmp.lt.s32.totalorder %s24, 3
        %s298 = scalar_select %p297, %s24, 3
        %s299 = scalar_lea.vmem %s3, %s298
        %v300 = vld [vmem:[%s242] sm:$0xff]
        %v301 = vld [vmem:[%s251] sm:$0xff]
        %v302 = vld [vmem:[%s260] sm:$0xff]
        %v303 = vld [vmem:[%s260 + $0x8] sm:$0xff]
        %v304 = vld [vmem:[%s260 + $0x10] sm:$0xff]
        %v305 = vld [vmem:[%s260 + $0x18] sm:$0xff]
        %v306 = vld [vmem:[%s299] sm:$0x1]
        %v308 = vlaneseq
        %v309 = vshrl.u32 %v308, 7
        %v310 = vsub.s32 0, %v309
        %v311 = vrot.slane %v306, %v310
        %vm313 = vcmask 261120
        %v315 = vsel %vm313, %v301, 0
        %317 = vmatprep.subr.mxu0 0.0
        %318 = vmatpush1.msra.mxu0 %v302
        %319 = vmatprep.subr.mxu0 0.0
        %320 = vmatpush1.msra.mxu0 %v303
        %321 = vmatprep.subr.mxu0 0.0
        %322 = vmatpush1.msra.mxu0 %v304
        %323 = vmatprep.subr.mxu0 0.0
        %324 = vmatpush1.msra.mxu0 %v305
        %325 = vmatprep.subr.mxu0 0.0
        %326 = vmatpush1.msra.mxu0 0.0
        %327 = vmatprep.subr.mxu0 0.0
        %328 = vmatpush1.msra.mxu0 0.0
        %329 = vmatprep.subr.mxu0 0.0
        %330 = vmatpush1.msra.mxu0 0.0
        %331 = vmatprep.subr.mxu0 0.0
        %332 = vmatpush1.msra.mxu0 0.0
        %333 = vmatprep.subr.mxu0 0.0
        %334 = vmatpush1.msra.mxu0 0.0
        %335 = vmatprep.subr.mxu0 0.0
        %336 = vmatpush1.msra.mxu0 0.0
        %337 = vmatprep.subr.mxu0 0.0
        %338 = vmatpush1.msra.mxu0 0.0
        %339 = vmatprep.subr.mxu0 0.0
        %340 = vmatpush1.msra.mxu0 0.0
        %341 = vmatprep.subr.mxu0 0.0
        %342 = vmatpush1.msra.mxu0 0.0
        %343 = vmatprep.subr.mxu0 0.0
        %344 = vmatpush1.msra.mxu0 0.0
        %345 = vmatprep.subr.mxu0 0.0
        %346 = vmatpush1.msra.mxu0 0.0
        %347 = vmatprep.subr.mxu0 0.0
        %348 = vmatpush1.msra.mxu0 0.0
        %349 = vmatprep.subr.mxu0 0.0
        %350 = vmatpush1.msra.mxu0 0.0
        %351 = vmatprep.subr.mxu0 0.0
        %352 = vmatpush1.msra.mxu0 0.0
        %353 = vmatprep.subr.mxu0 0.0
        %354 = vmatpush1.msra.mxu0 0.0
        %355 = vmatprep.subr.mxu0 0.0
        %356 = vmatpush1.msra.mxu0 0.0
        %357 = vmatprep.subr.mxu0 0.0
        %358 = vmatpush1.msra.mxu0 0.0
        %359 = vmatprep.subr.mxu0 0.0
        %360 = vmatpush1.msra.mxu0 0.0
        %361 = vmatprep.subr.mxu0 0.0
        %362 = vmatpush1.msra.mxu0 0.0
        %363 = vmatprep.subr.mxu0 0.0
        %364 = vmatpush1.msra.mxu0 0.0
        %365 = vmatprep.subr.mxu0 0.0
        %366 = vmatpush1.msra.mxu0 0.0
        %367 = vmatprep.subr.mxu0 0.0
        %368 = vmatpush1.msra.mxu0 0.0
        %369 = vmatprep.subr.mxu0 0.0
        %370 = vmatpush1.msra.mxu0 0.0
        %371 = vmatprep.subr.mxu0 0.0
        %372 = vmatpush1.msra.mxu0 0.0
        %373 = vmatprep.subr.mxu0 0.0
        %374 = vmatpush1.msra.mxu0 0.0
        %375 = vmatprep.subr.mxu0 0.0
        %376 = vmatpush1.msra.mxu0 0.0
        %377 = vmatprep.subr.mxu0 0.0
        %378 = vmatpush1.msra.mxu0 0.0
        %379 = vmatprep.subr.mxu0 0.0
        %380 = vmatpush1.msra.mxu0 0.0
        %381 = vmatprep.mubr.f32.mxu0 0.0
        %382 = vmatmul.mubr.f32.gmra.mrb[0].mxu0 %v315
        %v383 = vpop.f32.mrb[0].mxu0
        %v384 = vadd.f32 %v311, %v383
        %v385 = vpop.f32.mrb[0].mxu0
        %386 = vdwg.mxu0
        %v387 = vmul.f32 %v384, %v384
        %388 = vadd.xlane.f32.xlu0 %v387
        %v389 = vpop.xlane.xlu0 %388
        %v390 = vrsqrt.pop %v389
        %v391 = vmul.f32 %v384, %v390
        %v392 = vmul.f32 %v300, %v300
        %393 = vadd.xlane.f32.xlu0 %v392
        %v394 = vpop.xlane.xlu0 %393
        %v395 = vrsqrt.pop %v394
        %v396 = vmul.f32 %v300, %v395
        %v397 = vmul.f32 %v396, %v391
        %398 = vadd.xlane.f32.xlu0 %v397
        %v399 = vpop.xlane.xlu0 %398
        %400 = vmatprep.subr.mxu0 0.0
        %401 = vmatpush1.xpose.msra.mxu0 %v391
        %402 = vmatprep.subr.mxu0 0.0
        %403 = vmatpush1.xpose.msra.mxu0 0.0
        %404 = vmatprep.subr.mxu0 0.0
        %405 = vmatpush1.xpose.msra.mxu0 0.0
        %406 = vmatprep.subr.mxu0 0.0
        %407 = vmatpush1.xpose.msra.mxu0 0.0
        %408 = vmatprep.subr.mxu0 0.0
        %409 = vmatpush1.xpose.msra.mxu0 0.0
        %410 = vmatprep.subr.mxu0 0.0
        %411 = vmatpush1.xpose.msra.mxu0 0.0
        %412 = vmatprep.subr.mxu0 0.0
        %413 = vmatpush1.xpose.msra.mxu0 0.0
        %414 = vmatprep.subr.mxu0 0.0
        %415 = vmatpush1.xpose.msra.mxu0 0.0
        %416 = vmatprep.subr.mxu0 0.0
        %417 = vmatpush1.xpose.msra.mxu0 0.0
        %418 = vmatprep.subr.mxu0 0.0
        %419 = vmatpush1.xpose.msra.mxu0 0.0
        %420 = vmatprep.subr.mxu0 0.0
        %421 = vmatpush1.xpose.msra.mxu0 0.0
        %422 = vmatprep.subr.mxu0 0.0
        %423 = vmatpush1.xpose.msra.mxu0 0.0
        %424 = vmatprep.subr.mxu0 0.0
        %425 = vmatpush1.xpose.msra.mxu0 0.0
        %426 = vmatprep.subr.mxu0 0.0
        %427 = vmatpush1.xpose.msra.mxu0 0.0
        %428 = vmatprep.subr.mxu0 0.0
        %429 = vmatpush1.xpose.msra.mxu0 0.0
        %430 = vmatprep.subr.mxu0 0.0
        %431 = vmatpush1.xpose.msra.mxu0 0.0
        %432 = vmatprep.subr.mxu0 0.0
        %433 = vmatpush1.xpose.msra.mxu0 0.0
        %434 = vmatprep.subr.mxu0 0.0
        %435 = vmatpush1.xpose.msra.mxu0 0.0
        %436 = vmatprep.subr.mxu0 0.0
        %437 = vmatpush1.xpose.msra.mxu0 0.0
        %438 = vmatprep.subr.mxu0 0.0
        %439 = vmatpush1.xpose.msra.mxu0 0.0
        %440 = vmatprep.subr.mxu0 0.0
        %441 = vmatpush1.xpose.msra.mxu0 0.0
        %442 = vmatprep.subr.mxu0 0.0
        %443 = vmatpush1.xpose.msra.mxu0 0.0
        %444 = vmatprep.subr.mxu0 0.0
        %445 = vmatpush1.xpose.msra.mxu0 0.0
        %446 = vmatprep.subr.mxu0 0.0
        %447 = vmatpush1.xpose.msra.mxu0 0.0
        %448 = vmatprep.subr.mxu0 0.0
        %449 = vmatpush1.xpose.msra.mxu0 0.0
        %450 = vmatprep.subr.mxu0 0.0
        %451 = vmatpush1.xpose.msra.mxu0 0.0
        %452 = vmatprep.subr.mxu0 0.0
        %453 = vmatpush1.xpose.msra.mxu0 0.0
        %454 = vmatprep.subr.mxu0 0.0
        %455 = vmatpush1.xpose.msra.mxu0 0.0
        %456 = vmatprep.subr.mxu0 0.0
        %457 = vmatpush1.xpose.msra.mxu0 0.0
        %458 = vmatprep.subr.mxu0 0.0
        %459 = vmatpush1.xpose.msra.mxu0 0.0
        %460 = vmatprep.subr.mxu0 0.0
        %461 = vmatpush1.xpose.msra.mxu0 0.0
        %462 = vmatprep.subr.mxu0 0.0
        %463 = vmatpush1.xpose.msra.mxu0 0.0
        %464 = vmatprep.mubr.f32.mxu0 0.0
        %465 = vmatmul.mubr.f32.gmra.mrb[0].mxu0 %v396
        %v466 = vpop.f32.mrb[0].mxu0
        %v467 = vadd.f32 0.0, %v466
        %v468 = vpop.f32.mrb[0].mxu0
        %469 = vdwg.mxu0
        %v470 = vmul.f32 %v467, 1.442695
        %v471 = vpow.pop %v470
        %vm472 = vcmask 64512
        %v473 = vsel %vm472, %v471, 0.0
        %474 = vadd.xlane.f32.xlu0 %v473
        %v475 = vpop.xlane.xlu0 %474
        %v476 = vlog2.pop %v475
        %v477 = vmul.f32 %v476, 0.6931472
        %v478 = vsub.f32 %v399, %v477
        %vm479 = vcmask 7168
        %v480 = vsel %vm479, %v478, 0.0
        %481 = vadd.xlane.f32.xlu0 %v480
        %v482 = vpop.xlane.xlu0 %481
        %v483 = vrot.slane %v482, 4
        %v484 = vadd.f32 %v482, %v483
        %v485 = vrot.slane %v484, 2
        %v486 = vadd.f32 %v484, %v485
        %v487 = vrot.slane %v486, 1
        %v488 = vadd.f32 %v486, %v487
        %s489 = vtos %v488
        %v490 = vrcp.pop 8.0
        %s491 = vtos %v490
        %s492 = smul.f32 %s489, %s491
        %s493 = ssub.f32 0.0, %s492
        %v494 = vstv %s493
        %495 = vst [vmem:[%s296] sm:$0x1] %v494
        %s496 = sand.u32 %s136, 1
        %s497 = scalar_lea.sflag [#allocation4], %s496
        %s498 = sand.u32 %s136, 1
        %s499 = scalar_lea.vmem [#allocation8], %s498
        // Predicated region
        $region49: #{tpu_custom_call.1} parent=35 // pred_check
          %p500 = pneg %p146
        $region50: #{tpu_custom_call.1} parent=35 // pred_check_branch
          %502 = sbr.rel (%p500) target = $region52
        $region51: #{tpu_custom_call.1} parent=35 // pred_region
          %s504 = ssub.s32 16, 16
          %505 = vsyncadd %s497, %s504
          %s506 = smul.addr %s24, 16
          %s507 = scalar_lea.hbm %s4, %s506
          %s509 = sshll.u32 %s499, 4
          %s510 = int_to_ptr.vmem [resolvable:$true] %s509
          %512 = dma.vmem_to_hbm [thread:$0]  %s510, 16, %s507, %s497
        $region52: #{tpu_custom_call.1} parent=35 // pred_fallthru
          _
      $region36: #{tpu_custom_call.1} parent=5 // pred_fallthru
        _
      %p513 = scmp.le.s32.totalorder 2, %s19
      // Predicated region
      $region53: #{tpu_custom_call.1} parent=5 // pred_check
        %p514 = pneg %p513
      $region54: #{tpu_custom_call.1} parent=5 // pred_check_branch
        %516 = sbr.rel (%p514) target = $region56
      $region55: #{tpu_custom_call.1} parent=5 // pred_region
        %s517 = ssub.s32 %s19, 2
        // Predicated region
        $region57: #{tpu_custom_call.1} parent=55 // pred_check
          %p518 = pneg %p152
        $region58: #{tpu_custom_call.1} parent=55 // pred_check_branch
          %520 = sbr.rel (%p518) target = $region60
        $region59: #{tpu_custom_call.1} parent=55 // pred_region
          %s521 = sand.u32 %s137, 1
          %s522 = scalar_lea.sflag [#allocation4], %s521
          %s523 = sand.u32 %s137, 1
          %s524 = scalar_lea.vmem [#allocation8], %s523
          %525 = dma.done %s522, 16
        $region60: #{tpu_custom_call.1} parent=55 // pred_fallthru
          _
      $region56: #{tpu_custom_call.1} parent=5 // pred_fallthru
        _
    $region6: #{tpu_custom_call.1} parent=1 // loop_footer
      %s23 = sadd.s32 1, %s19
    $region7: #{tpu_custom_call.1} parent=1 // loop_footer_branch
      %18 = sbr.rel target = $region3
    $region8: #{tpu_custom_call.1} parent=1 // loop_exit
      _
    %526 = vsyncpa [#allocation3], 1
    %s527 = scalar_lea.sflag [#allocation3], 1
    %528 = vsyncpa %s527, 1
    %529 = vsyncpa [#allocation6], 1
    %s530 = scalar_lea.sflag [#allocation6], 1
    %531 = vsyncpa %s530, 1
    %532 = vsyncpa [#allocation4], 1
    %s533 = scalar_lea.sflag [#allocation4], 1
    %534 = vsyncpa %s533, 1

</llo_original>
